<compile_context>
chip_gen: v5e
topology: v5e:2x2
jax: 0.10.0
libtpu: 0.0.40
codegen_flags: <defaults>
</compile_context>

<pallas_src>
import jax
import jax.numpy as jnp
from jax.experimental import pallas as pl
from jax.experimental.pallas import tpu as pltpu


# ----------------------------------------------------------------------------
# Pallas kernel: fused 3-layer MLP
#   h1 = relu(obs @ W1o + act @ W1a + b1)      (bf16 MXU, f32 acc)
#   h2 = relu(h1 @ W2 + b2)                     (bf16 MXU, f32 acc)
#   q  = sum(h2 * w3_row, axis=-1) + b3         (VPU mul + XLU lane reduce)
# ----------------------------------------------------------------------------
def _mlp_q_kernel(obs_ref, act_ref, w1o_ref, w1a_ref, b1_ref,
                  w2_ref, b2_ref, w3_ref, b3_ref, o_ref):
    obs = obs_ref[...].astype(jnp.bfloat16)                       # [TB, obs_dim]
    act = act_ref[...].astype(jnp.bfloat16)                       # [TB, act_dim]

    # First layer: two small-K matmuls accumulate into one f32 result
    # (replaces the concatenated [obs, act] @ W1).
    h1 = jnp.dot(obs, w1o_ref[...], preferred_element_type=jnp.float32)
    h1 = h1 + jnp.dot(act, w1a_ref[...], preferred_element_type=jnp.float32)
    h1 = jnp.maximum(h1 + b1_ref[...], 0.0)                       # [TB, 256] f32

    h2 = jnp.dot(h1.astype(jnp.bfloat16), w2_ref[...],
                 preferred_element_type=jnp.float32)
    h2 = jnp.maximum(h2 + b2_ref[...], 0.0)                       # [TB, 128] f32

    # Final 128 -> 1 head: VPU multiply + lane reduction (no N=1 MXU pass).
    q = jnp.sum(h2 * w3_ref[...], axis=-1)                        # [TB]
    o_ref[...] = (q[None, :] + b3_ref[...]).astype(o_ref.dtype)   # [1, TB] lane-dense


def _mlp_q_pallas(obs, act, w1o, w1a, b1, w2, b2, w3, b3, *, block_b=512):
    """obs: [B, obs_dim] f32, act: [B, act_dim] f32 -> q: [B] f32."""
    B, obs_dim = obs.shape
    act_dim = act.shape[1]
    d_in = obs_dim + act_dim

    # Single full block for small batches; 512-row tiles (8/16-sublane aligned,
    # VMEM-bounded, software-pipelined) for large batches.
    tb = B if B <= block_b else block_b
    grid = (pl.cdiv(B, tb),)

    def resident(shape):  # weight / bias blocks stay in VMEM across the grid
        return pl.BlockSpec(shape, lambda i: (0, 0))

    flops = 2 * B * (d_in * 256 + 256 * 128 + 128)
    bytes_accessed = (4 * B * d_in            # obs/act reads (f32)
                      + 4 * B                 # q writes (f32)
                      + 2 * (d_in * 256 + 256 * 128)   # bf16 weights
                      + 4 * (256 + 128 + 128 + 1))     # f32 biases + w3 row

    q = pl.pallas_call(
        _mlp_q_kernel,
        out_shape=jax.ShapeDtypeStruct((1, B), jnp.float32),
        grid=grid,
        in_specs=[
            pl.BlockSpec((tb, obs_dim), lambda i: (i, 0)),
            pl.BlockSpec((tb, act_dim), lambda i: (i, 0)),
            resident((obs_dim, 256)),
            resident((act_dim, 256)),
            resident((1, 256)),
            resident((256, 128)),
            resident((1, 128)),
            resident((1, 128)),
            resident((1, 1)),
        ],
        out_specs=pl.BlockSpec((1, tb), lambda i: (0, i)),
        compiler_params=pltpu.CompilerParams(
            dimension_semantics=("parallel",)),
        cost_estimate=pl.CostEstimate(flops=flops, transcendentals=0,
                                      bytes_accessed=bytes_accessed),
    )(obs, act, w1o, w1a, b1, w2, b2, w3, b3)

    return q.reshape(-1)  # (B,) == torch.squeeze(q, -1) on a (B, 1) tensor


# ----------------------------------------------------------------------------
# Module-equivalent wrapper
# ----------------------------------------------------------------------------
class MLPQFunctionDSEPallas:
    def __init__(self, obs_dim, act_dim_list, key):
        self.obs_dim = obs_dim
        self.act_dim_list = list(act_dim_list)

        def init_linear(key, fan_in, fan_out):
            # same fan-in uniform scheme as nn.Linear; stored as [in, out]
            k_w, k_b = jax.random.split(key)
            bound = float(fan_in) ** -0.5
            w = jax.random.uniform(k_w, (fan_in, fan_out), jnp.float32, -bound, bound)
            b = jax.random.uniform(k_b, (1, fan_out), jnp.float32, -bound, bound)
            return w, b

        keys = jax.random.split(key, len(self.act_dim_list) + 2)

        # Per-head input layer, split into (W1_obs, W1_act, b1); weights in bf16.
        self.input_params = []
        for i, a in enumerate(self.act_dim_list):
            w, b = init_linear(keys[i], obs_dim + a, 256)
            self.input_params.append(
                (w[:obs_dim].astype(jnp.bfloat16),
                 w[obs_dim:].astype(jnp.bfloat16),
                 b))

        w2, b2 = init_linear(keys[-2], 256, 128)
        self.w2, self.b2 = w2.astype(jnp.bfloat16), b2

        w3, b3 = init_linear(keys[-1], 128, 1)
        self.w3 = w3.T           # (1, 128) f32 row, used by the VPU reduce
        self.b3 = b3             # (1, 1) f32

    def _forward(self, obs, act, head):
        w1o, w1a, b1 = self.input_params[head]
        return _mlp_q_pallas(obs, act, w1o, w1a, b1,
                             self.w2, self.b2, self.w3, self.b3)

    def __call__(self, obs, act, act_idx):
        if not isinstance(act, list):
            # batched branch: act_idx is a concrete head index
            head = int(act_idx)
            if obs.ndim == 1:
                return self._forward(obs[None, :], act[None, :], head)[0]
            return self._forward(obs, act, head)

        # list branch: group samples by head and run one batched call per head
        # (fixes the old per-sample B=1 kernel launches and the bad squeeze).
        idx_host = [int(i) for i in act_idx]
        n = len(idx_host)
        groups = {}
        for pos, h in enumerate(idx_host):
            groups.setdefault(h, []).append(pos)

        out = jnp.zeros((n,), jnp.float32)
        for h, positions in groups.items():
            obs_g = jnp.stack([jnp.asarray(obs[p]) for p in positions], axis=0)
            act_g = jnp.stack([jnp.asarray(act[p]) for p in positions], axis=0)
            q_g = self._forward(obs_g, act_g, h)
            out = out.at[jnp.array(positions, dtype=jnp.int32)].set(q_g)
        return out  # shape (n,) -- torch.squeeze on (n,) is a no-op


# ----------------------------------------------------------------------------
# Pure-JAX reference (mirrors the kernel numerics: bf16 matmuls, f32 acc)
# ----------------------------------------------------------------------------
def _mlp_q_ref(obs, act, w1o, w1a, b1, w2, b2, w3, b3):
    h1 = (jnp.dot(obs.astype(jnp.bfloat16), w1o, preferred_element_type=jnp.float32)
          + jnp.dot(act.astype(jnp.bfloat16), w1a, preferred_element_type=jnp.float32)
          + b1)
    h1 = jnp.maximum(h1, 0.0)
    h2 = jnp.dot(h1.astype(jnp.bfloat16), w2, preferred_element_type=jnp.float32) + b2
    h2 = jnp.maximum(h2, 0.0)
    return jnp.sum(h2 * w3, axis=-1) + b3[0, 0]


if __name__ == "__main__":
    key = jax.random.PRNGKey(0)
    k_param, k_obs, k_act0, k_act1 = jax.random.split(key, 4)

    obs_dim = 16
    act_dim_list = [8, 12]
    batch = 8

    qf = MLPQFunctionDSEPallas(obs_dim, act_dim_list, k_param)

    # --- batched branch (act_idx is a single int) ---
    obs = jax.random.normal(k_obs, (batch, obs_dim), jnp.float32)
    act = jax.random.normal(k_act0, (batch, act_dim_list[1]), jnp.float32)
    q = jax.block_until_ready(qf(obs, act, act_idx=1))
    assert q.shape == (batch,)

    q_ref = _mlp_q_ref(obs, act, *qf.input_params[1], qf.w2, qf.b2, qf.w3, qf.b3)
    assert jnp.allclose(q, q_ref, atol=1e-2, rtol=1e-2), (q, q_ref)

    # --- list branch (per-sample head selection, mirrors the PyTorch loop) ---
    n_list = 4
    obs_list = [obs[i] for i in range(n_list)]
    act_list = [
        jax.random.normal(jax.random.fold_in(k_act1, i),
                          (act_dim_list[i % 2],), jnp.float32)
        for i in range(n_list)
    ]
    act_idx_arr = jnp.array([0, 1, 0, 1], dtype=jnp.int32)
    q_list = jax.block_until_ready(qf(obs_list, act_list, act_idx_arr))
    assert q_list.shape == (n_list,)

    for i in range(n_list):
        h = int(act_idx_arr[i])
        qi = _mlp_q_ref(obs_list[i][None, :], act_list[i][None, :],
                        *qf.input_params[h], qf.w2, qf.b2, qf.w3, qf.b3)
        assert jnp.allclose(q_list[i], qi[0], atol=1e-2, rtol=1e-2), (i, q_list[i], qi)

    print("KERNEL_OK")
</pallas_src>

<mosaic_0001>
module attributes {stable_mosaic.version = 11 : i64} {
  func.func @_mlp_q_kernel(%arg0: i32, %arg1: memref<8x16xf32, #tpu.memory_space<vmem>>, %arg2: memref<8x12xf32, #tpu.memory_space<vmem>>, %arg3: memref<16x256xbf16, #tpu.memory_space<vmem>>, %arg4: memref<12x256xbf16, #tpu.memory_space<vmem>>, %arg5: memref<1x256xf32, #tpu.memory_space<vmem>>, %arg6: memref<256x128xbf16, #tpu.memory_space<vmem>>, %arg7: memref<1x128xf32, #tpu.memory_space<vmem>>, %arg8: memref<1x128xf32, #tpu.memory_space<vmem>>, %arg9: memref<1x1xf32, #tpu.memory_space<vmem>>, %arg10: memref<1x8xf32, #tpu.memory_space<vmem>>) attributes {dimension_semantics = [#tpu.dimension_semantics<parallel>], iteration_bounds = array<i64: 1>, scalar_prefetch = 0 : i64, scratch_operands = 0 : i64, tpu.core_type = #tpu.core_type<tc>, window_params = [{transform_indices = @transform_0, window_bounds = array<i64: 8, 16>}, {transform_indices = @transform_1, window_bounds = array<i64: 8, 12>}, {pipeline_mode = #tpu.pipeline_mode<synchronous>, transform_indices = @transform_2, window_bounds = array<i64: 16, 256>}, {pipeline_mode = #tpu.pipeline_mode<synchronous>, transform_indices = @transform_3, window_bounds = array<i64: 12, 256>}, {pipeline_mode = #tpu.pipeline_mode<synchronous>, transform_indices = @transform_4, window_bounds = array<i64: 1, 256>}, {pipeline_mode = #tpu.pipeline_mode<synchronous>, transform_indices = @transform_5, window_bounds = array<i64: 256, 128>}, {pipeline_mode = #tpu.pipeline_mode<synchronous>, transform_indices = @transform_6, window_bounds = array<i64: 1, 128>}, {pipeline_mode = #tpu.pipeline_mode<synchronous>, transform_indices = @transform_7, window_bounds = array<i64: 1, 128>}, {pipeline_mode = #tpu.pipeline_mode<synchronous>, transform_indices = @transform_8, window_bounds = array<i64: 1, 1>}, {transform_indices = @transform_9, window_bounds = array<i64: 1, 8>}]} {
    %c0 = arith.constant 0 : index
    %c0_0 = arith.constant 0 : index
    %0 = vector.load %arg1[%c0, %c0_0] : memref<8x16xf32, #tpu.memory_space<vmem>>, vector<8x16xf32>
    %1 = arith.truncf %0 : vector<8x16xf32> to vector<8x16xbf16>
    %c0_1 = arith.constant 0 : index
    %c0_2 = arith.constant 0 : index
    %2 = vector.load %arg2[%c0_1, %c0_2] : memref<8x12xf32, #tpu.memory_space<vmem>>, vector<8x12xf32>
    %3 = arith.truncf %2 : vector<8x12xf32> to vector<8x12xbf16>
    %c0_3 = arith.constant 0 : index
    %c0_4 = arith.constant 0 : index
    %4 = vector.load %arg3[%c0_3, %c0_4] : memref<16x256xbf16, #tpu.memory_space<vmem>>, vector<16x256xbf16>
    %cst = arith.constant dense<0.000000e+00> : vector<8x256xf32>
    %5 = tpu.matmul %1, %4, %cst {dimension_numbers = #tpu.dot_dimension_numbers<[1], [0], [0], [1], [0, 0, 1, 1], [], []>} : vector<8x16xbf16>, vector<16x256xbf16>, vector<8x256xf32> -> vector<8x256xf32>
    %c0_5 = arith.constant 0 : index
    %c0_6 = arith.constant 0 : index
    %6 = vector.load %arg4[%c0_5, %c0_6] : memref<12x256xbf16, #tpu.memory_space<vmem>>, vector<12x256xbf16>
    %cst_7 = arith.constant dense<0.000000e+00> : vector<8x256xf32>
    %7 = tpu.matmul %3, %6, %cst_7 {dimension_numbers = #tpu.dot_dimension_numbers<[1], [0], [0], [1], [0, 0, 1, 1], [], []>} : vector<8x12xbf16>, vector<12x256xbf16>, vector<8x256xf32> -> vector<8x256xf32>
    %8 = arith.addf %5, %7 : vector<8x256xf32>
    %c0_8 = arith.constant 0 : index
    %c0_9 = arith.constant 0 : index
    %9 = vector.load %arg5[%c0_8, %c0_9] : memref<1x256xf32, #tpu.memory_space<vmem>>, vector<1x256xf32>
    %10 = vector.broadcast %9 : vector<1x256xf32> to vector<8x256xf32>
    %11 = arith.addf %8, %10 : vector<8x256xf32>
    %cst_10 = arith.constant 0.000000e+00 : f32
    %12 = vector.broadcast %cst_10 : f32 to vector<8x256xf32>
    %13 = arith.maximumf %11, %12 : vector<8x256xf32>
    %14 = arith.truncf %13 : vector<8x256xf32> to vector<8x256xbf16>
    %c0_11 = arith.constant 0 : index
    %c0_12 = arith.constant 0 : index
    %15 = vector.load %arg6[%c0_11, %c0_12] : memref<256x128xbf16, #tpu.memory_space<vmem>>, vector<256x128xbf16>
    %cst_13 = arith.constant dense<0.000000e+00> : vector<8x128xf32>
    %16 = tpu.matmul %14, %15, %cst_13 {dimension_numbers = #tpu.dot_dimension_numbers<[1], [0], [0], [1], [0, 0, 1, 1], [], []>} : vector<8x256xbf16>, vector<256x128xbf16>, vector<8x128xf32> -> vector<8x128xf32>
    %c0_14 = arith.constant 0 : index
    %c0_15 = arith.constant 0 : index
    %17 = vector.load %arg7[%c0_14, %c0_15] : memref<1x128xf32, #tpu.memory_space<vmem>>, vector<1x128xf32>
    %18 = vector.broadcast %17 : vector<1x128xf32> to vector<8x128xf32>
    %19 = arith.addf %16, %18 : vector<8x128xf32>
    %cst_16 = arith.constant 0.000000e+00 : f32
    %20 = vector.broadcast %cst_16 : f32 to vector<8x128xf32>
    %21 = arith.maximumf %19, %20 : vector<8x128xf32>
    %c0_17 = arith.constant 0 : index
    %c0_18 = arith.constant 0 : index
    %22 = vector.load %arg8[%c0_17, %c0_18] : memref<1x128xf32, #tpu.memory_space<vmem>>, vector<1x128xf32>
    %23 = vector.broadcast %22 : vector<1x128xf32> to vector<8x128xf32>
    %24 = arith.mulf %21, %23 : vector<8x128xf32>
    %cst_19 = arith.constant dense<0.000000e+00> : vector<8xf32>
    %25 = vector.multi_reduction <add>, %24, %cst_19 [1] : vector<8x128xf32> to vector<8xf32>
    %26 = vector.shape_cast %25 : vector<8xf32> to vector<1x8xf32>
    %c0_20 = arith.constant 0 : index
    %c0_21 = arith.constant 0 : index
    %27 = vector.load %arg9[%c0_20, %c0_21] : memref<1x1xf32, #tpu.memory_space<vmem>>, vector<1x1xf32>
    %28 = vector.broadcast %27 : vector<1x1xf32> to vector<1x8xf32>
    %29 = arith.addf %26, %28 : vector<1x8xf32>
    %c0_22 = arith.constant 0 : index
    %c0_23 = arith.constant 0 : index
    %30 = vector.load %arg10[%c0_22, %c0_23] : memref<1x8xf32, #tpu.memory_space<vmem>>, vector<1x8xf32>
    tpu.vector_store %arg10[%c0_22, %c0_23], %29 {strides = array<i32>} : memref<1x8xf32, #tpu.memory_space<vmem>>, vector<1x8xf32>,
    return
  }
  func.func @transform_0(%arg0: i32) -> (i32, i32) {
    %c0_i32 = arith.constant 0 : i32
    %c0_i32_0 = arith.constant 0 : i32
    return %arg0, %c0_i32 : i32, i32
  }
  func.func @transform_1(%arg0: i32) -> (i32, i32) {
    %c0_i32 = arith.constant 0 : i32
    %c0_i32_0 = arith.constant 0 : i32
    return %arg0, %c0_i32 : i32, i32
  }
  func.func @transform_2(%arg0: i32) -> (i32, i32) {
    %c0_i32 = arith.constant 0 : i32
    %c0_i32_0 = arith.constant 0 : i32
    %c0_i32_1 = arith.constant 0 : i32
    return %c0_i32, %c0_i32_0 : i32, i32
  }
  func.func @transform_3(%arg0: i32) -> (i32, i32) {
    %c0_i32 = arith.constant 0 : i32
    %c0_i32_0 = arith.constant 0 : i32
    %c0_i32_1 = arith.constant 0 : i32
    return %c0_i32, %c0_i32_0 : i32, i32
  }
  func.func @transform_4(%arg0: i32) -> (i32, i32) {
    %c0_i32 = arith.constant 0 : i32
    %c0_i32_0 = arith.constant 0 : i32
    %c0_i32_1 = arith.constant 0 : i32
    return %c0_i32, %c0_i32_0 : i32, i32
  }
  func.func @transform_5(%arg0: i32) -> (i32, i32) {
    %c0_i32 = arith.constant 0 : i32
    %c0_i32_0 = arith.constant 0 : i32
    %c0_i32_1 = arith.constant 0 : i32
    return %c0_i32, %c0_i32_0 : i32, i32
  }
  func.func @transform_6(%arg0: i32) -> (i32, i32) {
    %c0_i32 = arith.constant 0 : i32
    %c0_i32_0 = arith.constant 0 : i32
    %c0_i32_1 = arith.constant 0 : i32
    return %c0_i32, %c0_i32_0 : i32, i32
  }
  func.func @transform_7(%arg0: i32) -> (i32, i32) {
    %c0_i32 = arith.constant 0 : i32
    %c0_i32_0 = arith.constant 0 : i32
    %c0_i32_1 = arith.constant 0 : i32
    return %c0_i32, %c0_i32_0 : i32, i32
  }
  func.func @transform_8(%arg0: i32) -> (i32, i32) {
    %c0_i32 = arith.constant 0 : i32
    %c0_i32_0 = arith.constant 0 : i32
    %c0_i32_1 = arith.constant 0 : i32
    return %c0_i32, %c0_i32_0 : i32, i32
  }
  func.func @transform_9(%arg0: i32) -> (i32, i32) {
    %c0_i32 = arith.constant 0 : i32
    %c0_i32_0 = arith.constant 0 : i32
    return %c0_i32, %arg0 : i32, i32
  }
}

</mosaic_0001>

<llo_original>
// kernel: tpu_custom_call.1
$region0: #{tpu_custom_call.1}
  #allocation0 [shape = 'u32[]', space=smem, size = 0x4, offset = 0x4, fixed_abs, tag = 'smem constant byte address 0x4 - core index']
  #allocation1 [shape = 'u32[72,128]{1,0:T(1,128)}', space=vmem, size = 0x9000, scoped, tag = 'internal scratch']
  #allocation2 [shape = 'f32[1,1]{1,0:T(1,128)S(1)}', space=vmem, size = 0x200, scoped, tag = 'scoped memory for tpu_custom_call.1']
  %s0 = inlined_call_operand.hbm [shape: f32[8,16], index: 0, kind: input, shape index: {}]
  %s1 = inlined_call_operand.hbm [shape: f32[8,12], index: 1, kind: input, shape index: {}]
  %s2 = inlined_call_operand.hbm [shape: bf16[16,256], index: 2, kind: input, shape index: {}]
  %s3 = inlined_call_operand.hbm [shape: bf16[12,256], index: 3, kind: input, shape index: {}]
  %s4 = inlined_call_operand.vmem [shape: f32[1,256], index: 4, kind: input, shape index: {}]
  %s5 = inlined_call_operand.hbm [shape: bf16[256,128], index: 5, kind: input, shape index: {}]
  %s6 = inlined_call_operand.vmem [shape: f32[1,128], index: 6, kind: input, shape index: {}]
  %s7 = inlined_call_operand.vmem [shape: f32[1,128], index: 7, kind: input, shape index: {}]
  %s8 = inlined_call_operand.<no memory space> [shape: f32[1,1], index: 8, kind: input, shape index: {}]
  %s9 = inlined_call_operand.hbm [shape: f32[1,8], index: 9, kind: output, shape index: {}]
  %s10 = sld [smem:[#allocation0]]
  $region66: #{tpu_custom_call.1} parent=0
    _
  %s12 = ssub.s32 1, %s10
  %s13 = scalar_select 0, %s12, %s10
  %v14 = vstv %s8
  %15 = vst [vmem:[#allocation2] sm:$0x1] %v14
  $region1: #{tpu_custom_call.1} parent=0
    #allocation3 [shape = 'u8[4096]{0}', space=vmem, size = 0x1000, scoped, tag = 'input window, operand 0, single buffered']
    #allocation4 [shape = 's32[1]{0}', space=sflag, size = 0x4, scoped, tag = 'scoped memory for tpu_custom_call.1']
    #allocation5 [shape = 's32[1]{0}', space=sflag, size = 0x4, scoped, tag = 'scoped memory for tpu_custom_call.1']
    #allocation6 [shape = 'u8[4096]{0}', space=vmem, size = 0x1000, scoped, tag = 'input window, operand 1, single buffered']
    #allocation7 [shape = 's32[1]{0}', space=sflag, size = 0x4, scoped, tag = 'scoped memory for tpu_custom_call.1']
    #allocation8 [shape = 'u8[8192]{0}', space=vmem, size = 0x2000, scoped, tag = 'input window, operand 2, single buffered']
    #allocation9 [shape = 'u8[8192]{0}', space=vmem, size = 0x2000, scoped, tag = 'input window, operand 3, single buffered']
    #allocation10 [shape = 's32[1]{0}', space=sflag, size = 0x4, scoped, tag = 'scoped memory for tpu_custom_call.1']
    #allocation11 [shape = 'u8[65536]{0}', space=vmem, size = 0x10000, scoped, tag = 'input window, operand 5, single buffered']
    #allocation12 [shape = 'u8[512]{0}', space=vmem, size = 0x400, scoped, tag = 'output window, operand 0, single buffered']
    %16 = vsyncpa [#allocation4], 0
    %17 = vsyncpa [#allocation7], 0
    %18 = vsyncpa [#allocation10], 0
    %19 = vsyncpa [#allocation5], 0
    // Predicated region
    $region2: #{tpu_custom_call.1} parent=1 // pred_check
      _
    $region3: #{tpu_custom_call.1} parent=1 // pred_check_branch
      %21 = sbr.rel (0) target = $region5
    $region4: #{tpu_custom_call.1} parent=1 // pred_region
      %23 = vsyncadd [#allocation4], 0
      %s25 = sshll.u32 %s0, 4
      %s26 = int_to_ptr.hbm [resolvable:$true] %s25
      %s27 = sshll.u32 [#allocation3], 4
      %s28 = int_to_ptr.vmem [resolvable:$true] %s27
      %30 = dma.hbm_to_vmem [thread:$0]  %s26, 128, %s28, [#allocation4]
    $region5: #{tpu_custom_call.1} parent=1 // pred_fallthru
      _
    // Predicated region
    $region6: #{tpu_custom_call.1} parent=1 // pred_check
      _
    $region7: #{tpu_custom_call.1} parent=1 // pred_check_branch
      %32 = sbr.rel (0) target = $region9
    $region8: #{tpu_custom_call.1} parent=1 // pred_region
      %34 = vsyncadd [#allocation7], 0
      %s36 = sshll.u32 %s1, 4
      %s37 = int_to_ptr.hbm [resolvable:$true] %s36
      %s38 = sshll.u32 [#allocation6], 4
      %s39 = int_to_ptr.vmem [resolvable:$true] %s38
      %41 = dma.hbm_to_vmem [thread:$0]  %s37, 128, %s39, [#allocation7]
    $region9: #{tpu_custom_call.1} parent=1 // pred_fallthru
      _
    // Predicated region
    $region10: #{tpu_custom_call.1} parent=1 // pred_check
      _
    $region11: #{tpu_custom_call.1} parent=1 // pred_check_branch
      %43 = sbr.rel (0) target = $region13
    $region12: #{tpu_custom_call.1} parent=1 // pred_region
      %45 = vsyncadd [#allocation7], 0
      %s46 = sshll.u32 %s2, 4
      %s47 = int_to_ptr.hbm [resolvable:$true] %s46
      %s48 = sshll.u32 [#allocation8], 4
      %s49 = int_to_ptr.vmem [resolvable:$true] %s48
      %54 = dma.hbm_to_vmem [thread:$0]  %s47, 256, %s49, [#allocation7], 128, 128, 8
    $region13: #{tpu_custom_call.1} parent=1 // pred_fallthru
      _
    // Predicated region
    $region14: #{tpu_custom_call.1} parent=1 // pred_check
      _
    $region15: #{tpu_custom_call.1} parent=1 // pred_check_branch
      %56 = sbr.rel (0) target = $region17
    $region16: #{tpu_custom_call.1} parent=1 // pred_region
      %58 = vsyncadd [#allocation10], 0
      %s59 = sshll.u32 %s3, 4
      %s60 = int_to_ptr.hbm [resolvable:$true] %s59
      %s61 = sshll.u32 [#allocation9], 4
      %s62 = int_to_ptr.vmem [resolvable:$true] %s61
      %67 = dma.hbm_to_vmem [thread:$0]  %s60, 256, %s62, [#allocation10], 128, 128, 8
    $region17: #{tpu_custom_call.1} parent=1 // pred_fallthru
      _
    // Predicated region
    $region18: #{tpu_custom_call.1} parent=1 // pred_check
      _
    $region19: #{tpu_custom_call.1} parent=1 // pred_check_branch
      %69 = sbr.rel (0) target = $region21
    $region20: #{tpu_custom_call.1} parent=1 // pred_region
      _
    $region21: #{tpu_custom_call.1} parent=1 // pred_fallthru
      _
    // Predicated region
    $region22: #{tpu_custom_call.1} parent=1 // pred_check
      _
    $region23: #{tpu_custom_call.1} parent=1 // pred_check_branch
      %71 = sbr.rel (0) target = $region25
    $region24: #{tpu_custom_call.1} parent=1 // pred_region
      %73 = vsyncadd [#allocation10], 0
      %s74 = sshll.u32 %s5, 4
      %s75 = int_to_ptr.hbm [resolvable:$true] %s74
      %s76 = sshll.u32 [#allocation11], 4
      %s77 = int_to_ptr.vmem [resolvable:$true] %s76
      %82 = dma.hbm_to_vmem [thread:$0]  %s75, 2048, %s77, [#allocation10], 64, 64, 4
    $region25: #{tpu_custom_call.1} parent=1 // pred_fallthru
      _
    // Predicated region
    $region26: #{tpu_custom_call.1} parent=1 // pred_check
      _
    $region27: #{tpu_custom_call.1} parent=1 // pred_check_branch
      %84 = sbr.rel (0) target = $region29
    $region28: #{tpu_custom_call.1} parent=1 // pred_region
      _
    $region29: #{tpu_custom_call.1} parent=1 // pred_fallthru
      _
    // Predicated region
    $region30: #{tpu_custom_call.1} parent=1 // pred_check
      _
    $region31: #{tpu_custom_call.1} parent=1 // pred_check_branch
      %86 = sbr.rel (0) target = $region33
    $region32: #{tpu_custom_call.1} parent=1 // pred_region
      _
    $region33: #{tpu_custom_call.1} parent=1 // pred_fallthru
      _
    // Predicated region
    $region34: #{tpu_custom_call.1} parent=1 // pred_check
      _
    $region35: #{tpu_custom_call.1} parent=1 // pred_check_branch
      %88 = sbr.rel (0) target = $region37
    $region36: #{tpu_custom_call.1} parent=1 // pred_region
      _
    $region37: #{tpu_custom_call.1} parent=1 // pred_fallthru
      _
    // Predicated region
    $region38: #{tpu_custom_call.1} parent=1 // pred_check
      _
    $region39: #{tpu_custom_call.1} parent=1 // pred_check_branch
      %90 = sbr.rel (0) target = $region41
    $region40: #{tpu_custom_call.1} parent=1 // pred_region
      %92 = dma.done [#allocation4], 128
    $region41: #{tpu_custom_call.1} parent=1 // pred_fallthru
      _
    // Predicated region
    $region42: #{tpu_custom_call.1} parent=1 // pred_check
      _
    $region43: #{tpu_custom_call.1} parent=1 // pred_check_branch
      %94 = sbr.rel (0) target = $region45
    $region44: #{tpu_custom_call.1} parent=1 // pred_region
      %96 = dma.done [#allocation7], 128
    $region45: #{tpu_custom_call.1} parent=1 // pred_fallthru
      _
    // Predicated region
    $region46: #{tpu_custom_call.1} parent=1 // pred_check
      _
    $region47: #{tpu_custom_call.1} parent=1 // pred_check_branch
      %98 = sbr.rel (0) target = $region49
    $region48: #{tpu_custom_call.1} parent=1 // pred_region
      %100 = dma.done [#allocation7], 256
    $region49: #{tpu_custom_call.1} parent=1 // pred_fallthru
      _
    // Predicated region
    $region50: #{tpu_custom_call.1} parent=1 // pred_check
      _
    $region51: #{tpu_custom_call.1} parent=1 // pred_check_branch
      %102 = sbr.rel (0) target = $region53
    $region52: #{tpu_custom_call.1} parent=1 // pred_region
      %104 = dma.done [#allocation10], 256
    $region53: #{tpu_custom_call.1} parent=1 // pred_fallthru
      _
    // Predicated region
    $region54: #{tpu_custom_call.1} parent=1 // pred_check
      _
    $region55: #{tpu_custom_call.1} parent=1 // pred_check_branch
      %106 = sbr.rel (0) target = $region57
    $region56: #{tpu_custom_call.1} parent=1 // pred_region
      %108 = dma.done [#allocation10], 2048
    $region57: #{tpu_custom_call.1} parent=1 // pred_fallthru
      _
    %v110 = vld [vmem:[#allocation3] sm:$0xff]
    %v111 = vpack.c.bf16 %v110, %v110
    %v112 = vld [vmem:[#allocation6] sm:$0xff]
    %v113 = vpack.c.bf16 %v112, %v112
    %v114 = vld [vmem:[#allocation8] sm:$0xff]
    %v115 = vld [vmem:[#allocation8 + $0x8] sm:$0xff]
    %v116 = vld [vmem:[#allocation9] sm:$0xff]
    %v117 = vld [vmem:[#allocation9 + $0x8] sm:$0x33]
    %v120 = vunpack.c.l.b16 %v116
    %v121 = vunpack.c.h.b16 %v116
    %v122 = vunpack.c.l.b16 %v117
    %v123 = vunpack.c.h.b16 %v117
    %v124 = vpack.c.b16 %v122, %v120
    %v125 = vpack.c.b16 %v123, %v121
    %vm126 = vcmask 97280
    %v128 = vsel %vm126, %v113, 0
    %vm130 = vcmask 1045504
    %v132 = vsel %vm130, %v124, 0
    %v135 = vsel %vm130, %v125, 0
    %137 = vmatpush.bf16.msra.mxu0 0
    %138 = vmatpush.bf16.msra.mxu0 0
    %139 = vmatpush.bf16.msra.mxu0 0
    %140 = vmatpush.bf16.msra.mxu0 0
    %141 = vmatpush.bf16.msra.mxu0 0
    %142 = vmatpush.bf16.msra.mxu0 0
    %143 = vmatpush.bf16.msra.mxu0 0
    %144 = vmatpush.bf16.msra.mxu0 %v132
    %145 = vmatmul.bf16.gmra.mxu0 %v128
    %v146 = vpop.f32.mrf.mxu0
    %v147 = vadd.f32 0.0, %v146
    %v148 = vpop.f32.mrf.mxu0
    %149 = vdwg.mxu0
    %150 = vmatpush.bf16.msra.mxu0 0
    %151 = vmatpush.bf16.msra.mxu0 0
    %152 = vmatpush.bf16.msra.mxu0 0
    %153 = vmatpush.bf16.msra.mxu0 0
    %154 = vmatpush.bf16.msra.mxu0 0
    %155 = vmatpush.bf16.msra.mxu0 0
    %156 = vmatpush.bf16.msra.mxu0 0
    %157 = vmatpush.bf16.msra.mxu0 %v135
    %158 = vmatmul.bf16.gmra.mxu0 %v128
    %v159 = vpop.f32.mrf.mxu0
    %v160 = vadd.f32 0.0, %v159
    %v161 = vpop.f32.mrf.mxu0
    %162 = vdwg.mxu0
    %v165 = vunpack.c.l.b16 %v114
    %v166 = vunpack.c.h.b16 %v114
    %v167 = vunpack.c.l.b16 %v115
    %v168 = vunpack.c.h.b16 %v115
    %v169 = vpack.c.b16 %v167, %v165
    %v170 = vpack.c.b16 %v168, %v166
    %vm173 = vcmask 130048
    %v175 = vsel %vm173, %v111, 0
    %177 = vmatpush.bf16.msra.mxu0 0
    %178 = vmatpush.bf16.msra.mxu0 0
    %179 = vmatpush.bf16.msra.mxu0 0
    %180 = vmatpush.bf16.msra.mxu0 0
    %181 = vmatpush.bf16.msra.mxu0 0
    %182 = vmatpush.bf16.msra.mxu0 0
    %183 = vmatpush.bf16.msra.mxu0 0
    %184 = vmatpush.bf16.msra.mxu0 %v169
    %185 = vmatmul.bf16.gmra.mxu0 %v175
    %v186 = vpop.f32.mrf.mxu0
    %v187 = vadd.f32 %v147, %v186
    %v188 = vpop.f32.mrf.mxu0
    %189 = vdwg.mxu0
    %190 = vmatpush.bf16.msra.mxu0 0
    %191 = vmatpush.bf16.msra.mxu0 0
    %192 = vmatpush.bf16.msra.mxu0 0
    %193 = vmatpush.bf16.msra.mxu0 0
    %194 = vmatpush.bf16.msra.mxu0 0
    %195 = vmatpush.bf16.msra.mxu0 0
    %196 = vmatpush.bf16.msra.mxu0 0
    %197 = vmatpush.bf16.msra.mxu0 %v170
    %198 = vmatmul.bf16.gmra.mxu0 %v175
    %v199 = vpop.f32.mrf.mxu0
    %v200 = vadd.f32 %v160, %v199
    %v201 = vpop.f32.mrf.mxu0
    %202 = vdwg.mxu0
    %v203 = vld [vmem:[%s4] sm:$0x3]
    %v205 = vperm.slane %v203, 0
    %v206 = vperm.slane %v203, 1
    %v209 = vadd.f32 %v187, %v205
    %v210 = vadd.f32 %v200, %v206
    %v211 = vmax.f32 %v209, 0.0
    %v212 = vmax.f32 %v210, 0.0
    %v213 = vpack.c.bf16 %v211, %v211
    %v214 = vpack.c.bf16 %v212, %v212
    %v215 = vld [vmem:[#allocation11] sm:$0xf]
    %v216 = vld [vmem:[#allocation11 + $0x4] sm:$0xf]
    %v217 = vld [vmem:[#allocation11 + $0x8] sm:$0xf]
    %v218 = vld [vmem:[#allocation11 + $0xc] sm:$0xf]
    %v219 = vld [vmem:[#allocation11 + $0x10] sm:$0xf]
    %v220 = vld [vmem:[#allocation11 + $0x14] sm:$0xf]
    %v221 = vld [vmem:[#allocation11 + $0x18] sm:$0xf]
    %v222 = vld [vmem:[#allocation11 + $0x1c] sm:$0xf]
    %v223 = vld [vmem:[#allocation11 + $0x20] sm:$0xf]
    %v224 = vld [vmem:[#allocation11 + $0x24] sm:$0xf]
    %v225 = vld [vmem:[#allocation11 + $0x28] sm:$0xf]
    %v226 = vld [vmem:[#allocation11 + $0x2c] sm:$0xf]
    %v227 = vld [vmem:[#allocation11 + $0x30] sm:$0xf]
    %v228 = vld [vmem:[#allocation11 + $0x34] sm:$0xf]
    %v229 = vld [vmem:[#allocation11 + $0x38] sm:$0xf]
    %v230 = vld [vmem:[#allocation11 + $0x3c] sm:$0xf]
    %v231 = vld [vmem:[#allocation11 + $0x40] sm:$0xf]
    %v232 = vld [vmem:[#allocation11 + $0x44] sm:$0xf]
    %v233 = vld [vmem:[#allocation11 + $0x48] sm:$0xf]
    %v234 = vld [vmem:[#allocation11 + $0x4c] sm:$0xf]
    %v235 = vld [vmem:[#allocation11 + $0x50] sm:$0xf]
    %v236 = vld [vmem:[#allocation11 + $0x54] sm:$0xf]
    %v237 = vld [vmem:[#allocation11 + $0x58] sm:$0xf]
    %v238 = vld [vmem:[#allocation11 + $0x5c] sm:$0xf]
    %v239 = vld [vmem:[#allocation11 + $0x60] sm:$0xf]
    %v240 = vld [vmem:[#allocation11 + $0x64] sm:$0xf]
    %v241 = vld [vmem:[#allocation11 + $0x68] sm:$0xf]
    %v242 = vld [vmem:[#allocation11 + $0x6c] sm:$0xf]
    %v243 = vld [vmem:[#allocation11 + $0x70] sm:$0xf]
    %v244 = vld [vmem:[#allocation11 + $0x74] sm:$0xf]
    %v245 = vld [vmem:[#allocation11 + $0x78] sm:$0xf]
    %v246 = vld [vmem:[#allocation11 + $0x7c] sm:$0xf]
    %v247 = vld [vmem:[%s6] sm:$0x1]
    %v249 = vperm.slane %v247, 0
    %v283 = vunpack.c.l.b16 %v215
    %v284 = vunpack.c.l.b16 %v216
    %v285 = vunpack.c.l.b16 %v217
    %v286 = vunpack.c.l.b16 %v218
    %v287 = vunpack.c.l.b16 %v219
    %v288 = vunpack.c.l.b16 %v220
    %v289 = vunpack.c.l.b16 %v221
    %v290 = vunpack.c.l.b16 %v222
    %v291 = vunpack.c.l.b16 %v223
    %v292 = vunpack.c.l.b16 %v224
    %v293 = vunpack.c.l.b16 %v225
    %v294 = vunpack.c.l.b16 %v226
    %v295 = vunpack.c.l.b16 %v227
    %v296 = vunpack.c.l.b16 %v228
    %v297 = vunpack.c.l.b16 %v229
    %v298 = vunpack.c.l.b16 %v230
    %v299 = vunpack.c.l.b16 %v231
    %v300 = vunpack.c.l.b16 %v232
    %v301 = vunpack.c.l.b16 %v233
    %v302 = vunpack.c.l.b16 %v234
    %v303 = vunpack.c.l.b16 %v235
    %v304 = vunpack.c.l.b16 %v236
    %v305 = vunpack.c.l.b16 %v237
    %v306 = vunpack.c.l.b16 %v238
    %v307 = vunpack.c.l.b16 %v239
    %v308 = vunpack.c.l.b16 %v240
    %v309 = vunpack.c.l.b16 %v241
    %v310 = vunpack.c.l.b16 %v242
    %v311 = vunpack.c.l.b16 %v243
    %v312 = vunpack.c.l.b16 %v244
    %v313 = vunpack.c.l.b16 %v245
    %v314 = vunpack.c.l.b16 %v246
    %v315 = vpack.c.b16 %v284, %v283
    %v316 = vpack.c.b16 %v286, %v285
    %v317 = vpack.c.b16 %v288, %v287
    %v318 = vpack.c.b16 %v290, %v289
    %v319 = vpack.c.b16 %v292, %v291
    %v320 = vpack.c.b16 %v294, %v293
    %v321 = vpack.c.b16 %v296, %v295
    %v322 = vpack.c.b16 %v298, %v297
    %v323 = vpack.c.b16 %v300, %v299
    %v324 = vpack.c.b16 %v302, %v301
    %v325 = vpack.c.b16 %v304, %v303
    %v326 = vpack.c.b16 %v306, %v305
    %v327 = vpack.c.b16 %v308, %v307
    %v328 = vpack.c.b16 %v310, %v309
    %v329 = vpack.c.b16 %v312, %v311
    %v330 = vpack.c.b16 %v314, %v313
    %347 = vmatpush.bf16.msra.mxu0 %v322
    %348 = vmatpush.bf16.msra.mxu0 %v321
    %349 = vmatpush.bf16.msra.mxu0 %v320
    %350 = vmatpush.bf16.msra.mxu0 %v319
    %351 = vmatpush.bf16.msra.mxu0 %v318
    %352 = vmatpush.bf16.msra.mxu0 %v317
    %353 = vmatpush.bf16.msra.mxu0 %v316
    %354 = vmatpush.bf16.msra.mxu0 %v315
    %355 = vmatmul.bf16.gmra.mxu0 %v213
    %v356 = vpop.f32.mrf.mxu0
    %v357 = vadd.f32 %v249, %v356
    %v358 = vpop.f32.mrf.mxu0
    %359 = vdwg.mxu0
    %360 = vmatpush.bf16.msra.mxu0 %v330
    %361 = vmatpush.bf16.msra.mxu0 %v329
    %362 = vmatpush.bf16.msra.mxu0 %v328
    %363 = vmatpush.bf16.msra.mxu0 %v327
    %364 = vmatpush.bf16.msra.mxu0 %v326
    %365 = vmatpush.bf16.msra.mxu0 %v325
    %366 = vmatpush.bf16.msra.mxu0 %v324
    %367 = vmatpush.bf16.msra.mxu0 %v323
    %368 = vmatmul.bf16.gmra.mxu0 %v214
    %v369 = vpop.f32.mrf.mxu0
    %v370 = vadd.f32 %v357, %v369
    %v371 = vpop.f32.mrf.mxu0
    %372 = vdwg.mxu0
    %v373 = vmax.f32 %v370, 0.0
    %v374 = vld [vmem:[%s7] sm:$0x1]
    %v376 = vperm.slane %v374, 0
    %v378 = vmul.f32 %v373, %v376
    %379 = vadd.xlane.f32.xlu0 %v378
    %v380 = vpop.xlane.xlu0 %379
    %v381 = vld [vmem:[#allocation2] sm:$0x1]
    %383 = vset.pattern.permute.xlu0 0
    %384 = vperm.xlu0 %383, %v381
    %v385 = vpop.permute.xlu0 %384
    %v387 = vperm.slane %v385, 0
    %v388 = vadd.f32 %v380, %v387
    %v390 = vlaneseq
    %v391 = vand.u32 %v390, 127
    %v392 = vperm.slane %v388, %v391
    %vm394 = vcmask 57344
    %395 = vst.msk [vmem:[#allocation12] sm:$0x1] %vm394, %v392
    // Predicated region
    $region58: #{tpu_custom_call.1} parent=1 // pred_check
      _
    $region59: #{tpu_custom_call.1} parent=1 // pred_check_branch
      %397 = sbr.rel (0) target = $region61
    $region60: #{tpu_custom_call.1} parent=1 // pred_region
      %399 = vsyncadd [#allocation5], 0
      %s401 = sshll.u32 [#allocation12], 4
      %s402 = int_to_ptr.vmem [resolvable:$true] %s401
      %s403 = sshll.u32 %s9, 4
      %s404 = int_to_ptr.hbm [resolvable:$true] %s403
      %406 = dma.vmem_to_hbm [thread:$0]  %s402, 16, %s404, [#allocation5]
    $region61: #{tpu_custom_call.1} parent=1 // pred_fallthru
      _
    // Predicated region
    $region62: #{tpu_custom_call.1} parent=1 // pred_check
      _
    $region63: #{tpu_custom_call.1} parent=1 // pred_check_branch
      %408 = sbr.rel (0) target = $region65
    $region64: #{tpu_custom_call.1} parent=1 // pred_region
      %410 = dma.done [#allocation5], 16
    $region65: #{tpu_custom_call.1} parent=1 // pred_fallthru
      _
    %411 = vsyncpa [#allocation4], 1
    %412 = vsyncpa [#allocation7], 1
    %413 = vsyncpa [#allocation10], 1
    %414 = vsyncpa [#allocation5], 1

</llo_original>
